<compile_context>
chip_gen: v5e
topology: v5e:2x2
jax: 0.10.0
libtpu: 0.0.40
codegen_flags: <defaults>
</compile_context>

<pallas_src>
import jax
import jax.numpy as jnp
from jax.experimental import pallas as pl
from jax.experimental.pallas import tpu as pltpu

H = W = 16          # spatial size of the reference / rendered image
NPIX = H * W        # 256 -> two full 128-lane vregs per row

# Packed static-input row layout (8, NPIX):
#   row 0: 0.8 * shade      (R channel mask)
#   row 1: 0.6 * shade      (G channel mask)
#   row 2: 1.0 * shade      (B channel mask)
#   row 3: ones             (A channel mask)
#   row 4: rho4 = 4 * sqrt(x^2 + y^2)
#   row 5: image_ref silhouette (0/1)
#   rows 6-7: zero padding (keeps the buffer a full 8-sublane tile)
ROW_RHO4 = 4
ROW_REF = 5


# ----------------------------------------------------------------------------
# Plain-JAX glue: look_at_rotation (PyTorch3D semantics). A handful of scalar
# FLOPs; keeping them in XLA is strictly cheaper than a kernel launch.
# ----------------------------------------------------------------------------
def _normalize(v, eps=1e-12):
    n = jnp.sqrt(jnp.sum(v * v, axis=-1, keepdims=True))
    return v / jnp.maximum(n, eps)


def look_at_rotation(camera_position):
    # camera_position: (N, 3), at = origin, up = (0, 1, 0)
    at = jnp.zeros((1, 3), jnp.float32)
    up = jnp.broadcast_to(jnp.array([0.0, 1.0, 0.0], jnp.float32), camera_position.shape)
    z_axis = _normalize(at - camera_position)
    x_axis = _normalize(jnp.cross(up, z_axis))
    y_axis = _normalize(jnp.cross(z_axis, x_axis))
    is_close = jnp.all(jnp.isclose(x_axis, 0.0, atol=5e-3), axis=1, keepdims=True)
    x_axis = jnp.where(is_close, _normalize(jnp.cross(y_axis, z_axis)), x_axis)
    R = jnp.concatenate(
        [x_axis[:, None, :], y_axis[:, None, :], z_axis[:, None, :]], axis=1
    )
    return jnp.transpose(R, (0, 2, 1))  # (N, 3, 3)


# ----------------------------------------------------------------------------
# One-time setup (mirrors the PyTorch module's __init__ buffers): threshold the
# reference image and precompute every pixel-grid-only quantity.
# ----------------------------------------------------------------------------
def build_packed_inputs(image_ref_normal):
    # image_ref buffer: (image_ref[..., :3].max(-1) >= 0.2).astype(float32)
    image_ref = (jnp.max(image_ref_normal[..., :3], axis=-1) >= 0.2).astype(jnp.float32)
    image_ref_flat = image_ref.reshape(NPIX)

    xs = jnp.broadcast_to(
        jnp.linspace(-1.0, 1.0, W, dtype=jnp.float32)[None, :], (H, W)
    ).reshape(NPIX)
    ys = jnp.broadcast_to(
        jnp.linspace(-1.0, 1.0, H, dtype=jnp.float32)[:, None], (H, W)
    ).reshape(NPIX)
    rho = jnp.sqrt(xs * xs + ys * ys)
    rho4 = 4.0 * rho
    shade = jnp.clip(1.0 - 0.5 * rho, 0.0, 1.0)
    zeros = jnp.zeros_like(shade)

    packed = jnp.stack(
        [0.8 * shade, 0.6 * shade, 1.0 * shade, jnp.ones_like(shade),
         rho4, image_ref_flat, zeros, zeros],
        axis=0,
    ).astype(jnp.float32)                                  # (8, NPIX)
    return packed


# ----------------------------------------------------------------------------
# Single fused Pallas kernel: rasterizer stub + squared-error loss.
# ----------------------------------------------------------------------------
def _fused_render_loss_kernel(d_ref, packed_ref, img_ref, loss_ref):
    d = d_ref[0]                                           # camera distance (SMEM scalar)

    packed = packed_ref[...]                               # (8, NPIX), one full load
    rho4 = packed[ROW_RHO4:ROW_RHO4 + 1, :]                # (1, NPIX)
    ref = packed[ROW_REF:ROW_REF + 1, :]                   # (1, NPIX)

    logits = 8.0 - d * rho4                                # soft silhouette boundary
    # sigmoid via EUP exp + approx reciprocal (keeps the divide off the VPU)
    alpha = pl.reciprocal(1.0 + jnp.exp(-logits), approx=True)

    # Full (8, NPIX) store: rows 0-3 are RGBA (alpha * channel masks); rows 4-7
    # carry alpha*rho4, alpha*ref, 0, 0 and are dropped by the wrapper slice.
    img_ref[...] = alpha * packed

    # loss = sum((alpha - image_ref)^2), reduced in-register, landed in SMEM.
    diff = alpha - ref
    loss_ref[0, 0] = jnp.sum(diff * diff)


def fused_render_and_loss(d, packed):
    # Single gridless launch: whole problem is ~2 vregs per operand.
    img8, loss = pl.pallas_call(
        _fused_render_loss_kernel,
        out_shape=(
            jax.ShapeDtypeStruct((8, NPIX), jnp.float32),   # RGBA in rows 0-3
            jax.ShapeDtypeStruct((1, 1), jnp.float32),      # scalar loss
        ),
        in_specs=[
            pl.BlockSpec(memory_space=pltpu.MemorySpace.SMEM),   # d (scalar)
            pl.BlockSpec(memory_space=pltpu.MemorySpace.VMEM),   # packed (8, NPIX)
        ],
        out_specs=(
            pl.BlockSpec(memory_space=pltpu.MemorySpace.VMEM),   # image tile
            pl.BlockSpec(memory_space=pltpu.MemorySpace.SMEM),   # loss scalar
        ),
    )(d, packed)
    return img8, loss


# ----------------------------------------------------------------------------
# Estimator.forward equivalent
# ----------------------------------------------------------------------------
@jax.jit
def estimator_forward(camera_position, packed):
    # forward():
    R = look_at_rotation(camera_position[None, :])          # (1, 3, 3)
    # T = -bmm(R^T, p) == -(p @ R): 9 FLOPs, stays in XLA next to look_at_rotation.
    T = -(camera_position @ R[0])                            # (3,)
    d = jnp.sqrt(jnp.sum(T * T)).reshape(1)                  # scalar camera distance

    img8, loss = fused_render_and_loss(d, packed)

    # rows 0-3 of the (8, H*W) tile -> (1, H, W, 4) NHWC RGBA, matching the
    # PyTorch3D renderer output layout the original module consumes.
    image = jnp.transpose(img8[:4].reshape(4, H, W), (1, 2, 0))[None]
    return loss[0, 0], image


if __name__ == "__main__":
    key = jax.random.PRNGKey(0)
    # deterministic "reference image" (stands in for the numpy image_ref arg)
    image_ref_normal = jax.random.uniform(key, (1, H, W, 4), dtype=jnp.float32)
    # nn.Parameter init from the module: camera at (0, 0, +2.5)
    camera_position = jnp.array([0.0, 0.0, 2.5], dtype=jnp.float32)

    # __init__-time buffers: thresholded silhouette + static pixel-grid constants.
    packed = build_packed_inputs(image_ref_normal)          # (8, NPIX)

    loss, image = estimator_forward(camera_position, packed)
    jax.block_until_ready((loss, image))

    assert image.shape == (1, H, W, 4)
    assert loss.shape == ()
    assert bool(jnp.isfinite(loss))
    print("KERNEL_OK")
</pallas_src>

<mosaic_0001>
module attributes {stable_mosaic.version = 11 : i64} {
  func.func @_fused_render_loss_kernel(%arg0: memref<1xf32, #tpu.memory_space<smem>>, %arg1: memref<8x256xf32, #tpu.memory_space<vmem>>, %arg2: memref<8x256xf32, #tpu.memory_space<vmem>>, %arg3: memref<1x1xf32, #tpu.memory_space<smem>>) attributes {dimension_semantics = [], scalar_prefetch = 0 : i64, scratch_operands = 0 : i64, tpu.core_type = #tpu.core_type<tc>} {
    %c0 = arith.constant 0 : index
    %0 = memref.load %arg0[%c0] : memref<1xf32, #tpu.memory_space<smem>>
    %c0_0 = arith.constant 0 : index
    %c0_1 = arith.constant 0 : index
    %1 = vector.load %arg1[%c0_0, %c0_1] : memref<8x256xf32, #tpu.memory_space<vmem>>, vector<8x256xf32>
    %2 = vector.extract_strided_slice %1 {offsets = [4, 0], sizes = [1, 256], strides = [1, 1]} : vector<8x256xf32> to vector<1x256xf32>
    %3 = vector.extract_strided_slice %1 {offsets = [5, 0], sizes = [1, 256], strides = [1, 1]} : vector<8x256xf32> to vector<1x256xf32>
    %4 = vector.broadcast %0 : f32 to vector<1x256xf32>
    %5 = arith.mulf %4, %2 : vector<1x256xf32>
    %cst = arith.constant 8.000000e+00 : f32
    %6 = vector.broadcast %cst : f32 to vector<1x256xf32>
    %7 = arith.subf %6, %5 : vector<1x256xf32>
    %cst_2 = arith.constant 0.000000e+00 : f32
    %8 = vector.broadcast %cst_2 : f32 to vector<1x256xf32>
    %9 = arith.subf %8, %7 : vector<1x256xf32>
    %10 = math.exp %9 : vector<1x256xf32>
    %cst_3 = arith.constant 1.000000e+00 : f32
    %11 = vector.broadcast %cst_3 : f32 to vector<1x256xf32>
    %12 = arith.addf %11, %10 : vector<1x256xf32>
    %13 = tpu.reciprocal %12 {approx = true} : vector<1x256xf32> -> vector<1x256xf32>
    %14 = vector.broadcast %13 : vector<1x256xf32> to vector<8x256xf32>
    %15 = arith.mulf %14, %1 : vector<8x256xf32>
    %c0_4 = arith.constant 0 : index
    %c0_5 = arith.constant 0 : index
    %16 = vector.load %arg2[%c0_4, %c0_5] : memref<8x256xf32, #tpu.memory_space<vmem>>, vector<8x256xf32>
    tpu.vector_store %arg2[%c0_4, %c0_5], %15 {strides = array<i32>} : memref<8x256xf32, #tpu.memory_space<vmem>>, vector<8x256xf32>,
    %17 = arith.subf %13, %3 : vector<1x256xf32>
    %18 = arith.mulf %17, %17 : vector<1x256xf32>
    %19 = vector.shape_cast %18 : vector<1x256xf32> to vector<1x1x256xf32>
    %cst_6 = arith.constant dense<0.000000e+00> : vector<1xf32>
    %20 = vector.multi_reduction <add>, %19, %cst_6 [1, 2] : vector<1x1x256xf32> to vector<1xf32>
    %21 = vector.shape_cast %20 : vector<1xf32> to vector<1x1x1xf32>
    %22 = vector.extract %21[0, 0, 0] : f32 from vector<1x1x1xf32>
    %c0_7 = arith.constant 0 : index
    %c0_8 = arith.constant 0 : index
    %23 = memref.load %arg3[%c0_7, %c0_8] : memref<1x1xf32, #tpu.memory_space<smem>>
    memref.store %22, %arg3[%c0_7, %c0_8] : memref<1x1xf32, #tpu.memory_space<smem>>
    return
  }
}

</mosaic_0001>

<llo_original>
// kernel: estimator_forward.1
$region0: #{estimator_forward.1}
  #allocation0 [shape = 'u32[]', space=smem, size = 0x4, offset = 0x4, fixed_abs, tag = 'smem constant byte address 0x4 - core index']
  #allocation1 [shape = 'u32[72,128]{1,0:T(1,128)}', space=vmem, size = 0x9000, scoped, tag = 'internal scratch']
  #allocation2 [shape = 'f32[1]{0:T(128)S(6)}', space=smem, size = 0x200, scoped, tag = 'scoped memory for estimator_forward.1']
  %s0 = inlined_call_operand.<no memory space> [shape: f32[1], index: 0, kind: input, shape index: {}]
  %s1 = inlined_call_operand.vmem [shape: f32[8,256], index: 1, kind: input, shape index: {}]
  %s2 = inlined_call_operand.vmem [shape: f32[8,256], index: 2, kind: output, shape index: {0}]
  %s3 = inlined_call_operand.hbm [shape: f32[1,1], index: 3, kind: output, shape index: {1}]
  %4 = xla_tuple %s2, %s3
  %s5 = sld [smem:[#allocation0]]
  $region26: #{estimator_forward.1} parent=0
    _
  %s7 = ssub.s32 1, %s5
  %s8 = scalar_select 0, %s7, %s5
  %9 = sst [smem:[#allocation2]] %s0
  $region1: #{estimator_forward.1} parent=0
    #allocation3 [shape = 'u8[512]{0}', space=smem, size = 0x200, scoped, tag = 'output window, operand 1, single buffered']
    #allocation4 [shape = 's32[1]{0}', space=sflag, size = 0x4, scoped, tag = 'scoped memory for estimator_forward.1']
    %10 = vsyncpa [#allocation4], 0
    // Predicated region
    $region2: #{estimator_forward.1} parent=1 // pred_check
      _
    $region3: #{estimator_forward.1} parent=1 // pred_check_branch
      %12 = sbr.rel (0) target = $region5
    $region4: #{estimator_forward.1} parent=1 // pred_region
      _
    $region5: #{estimator_forward.1} parent=1 // pred_fallthru
      _
    // Predicated region
    $region6: #{estimator_forward.1} parent=1 // pred_check
      _
    $region7: #{estimator_forward.1} parent=1 // pred_check_branch
      %14 = sbr.rel (0) target = $region9
    $region8: #{estimator_forward.1} parent=1 // pred_region
      _
    $region9: #{estimator_forward.1} parent=1 // pred_fallthru
      _
    %s15 = sld [smem:[#allocation2]]
    %v16 = vld [vmem:[%s1] sm:$0xff]
    %v17 = vld [vmem:[%s1 + $0x8] sm:$0xff]
    %v18 = vstv %s15
    %v19 = vmul.f32 %v18, %v16
    %v20 = vmul.f32 %v18, %v17
    %v21 = vsub.f32 8.0, %v19
    %v22 = vsub.f32 8.0, %v20
    %v23 = vsub.f32 0.0, %v21
    %v24 = vsub.f32 0.0, %v22
    %v25 = vmul.f32 %v23, 1.442695
    %v26 = vpow.pop %v25
    %v27 = vmul.f32 %v24, 1.442695
    %v28 = vpow.pop %v27
    %v29 = vadd.f32 %v26, 1.0
    %v30 = vadd.f32 %v28, 1.0
    %v31 = vrcp.pop %v29
    %v32 = vrcp.pop %v30
    %v33 = vperm.slane %v31, 4
    %v34 = vperm.slane %v32, 4
    %v35 = vmul.f32 %v33, %v16
    %v36 = vmul.f32 %v34, %v17
    %37 = vst [vmem:[%s2] sm:$0xff] %v35
    %38 = vst [vmem:[%s2 + $0x8] sm:$0xff] %v36
    %v41 = vrot.slane %v16, 1
    %v42 = vrot.slane %v17, 1
    %v45 = vsub.f32 %v31, %v41
    %v46 = vsub.f32 %v32, %v42
    %v47 = vmul.f32 %v45, %v45
    %v48 = vmul.f32 %v46, %v46
    %v51 = vrot.slane %v47, 4
    %v52 = vrot.slane %v48, 4
    %vm55 = vcmask 1040384
    %v56 = vsel %vm55, %v51, 0.0
    %v57 = vsel %vm55, %v52, 0.0
    %v58 = vadd.f32 %v56, %v57
    %59 = vadd.xlane.f32.xlu0 %v58
    %v60 = vpop.xlane.xlu0 %59
    %v61 = vrot.slane %v60, 4
    %v62 = vadd.f32 %v60, %v61
    %v63 = vrot.slane %v62, 2
    %v64 = vadd.f32 %v62, %v63
    %v65 = vrot.slane %v64, 1
    %v66 = vadd.f32 %v64, %v65
    %s67 = vtos %v66
    %s68 = scalar_lea.smem [#allocation3], 0
    %69 = sst [smem:[%s68]] %s67
    // Predicated region
    $region10: #{estimator_forward.1} parent=1 // pred_check
      _
    $region11: #{estimator_forward.1} parent=1 // pred_check_branch
      %71 = sbr.rel (0) target = $region13
    $region12: #{estimator_forward.1} parent=1 // pred_region
      _
    $region13: #{estimator_forward.1} parent=1 // pred_fallthru
      _
    // Predicated region
    $region14: #{estimator_forward.1} parent=1 // pred_check
      _
    $region15: #{estimator_forward.1} parent=1 // pred_check_branch
      %73 = sbr.rel (0) target = $region17
    $region16: #{estimator_forward.1} parent=1 // pred_region
      %75 = vsyncadd [#allocation4], 0
      %s77 = sshll.u32 %s3, 4
      %s78 = int_to_ptr.hbm [resolvable:$true] %s77
      %80 = dma.smem_to_hbm [#allocation3], 16, %s78, [#allocation4]
    $region17: #{estimator_forward.1} parent=1 // pred_fallthru
      _
    // Predicated region
    $region18: #{estimator_forward.1} parent=1 // pred_check
      _
    $region19: #{estimator_forward.1} parent=1 // pred_check_branch
      %82 = sbr.rel (0) target = $region21
    $region20: #{estimator_forward.1} parent=1 // pred_region
      _
    $region21: #{estimator_forward.1} parent=1 // pred_fallthru
      _
    // Predicated region
    $region22: #{estimator_forward.1} parent=1 // pred_check
      _
    $region23: #{estimator_forward.1} parent=1 // pred_check_branch
      %84 = sbr.rel (0) target = $region25
    $region24: #{estimator_forward.1} parent=1 // pred_region
      %86 = dma.done [#allocation4], 16
    $region25: #{estimator_forward.1} parent=1 // pred_fallthru
      _
    %87 = sfence
    %88 = vsyncpa [#allocation4], 1

</llo_original>
